<compile_context>
chip_gen: v6e
topology: v6e:2x2x1
jax: 0.10.0
libtpu: 0.0.40
codegen_flags: <defaults>
</compile_context>

<pallas_src>
import jax
import jax.numpy as jnp
from jax import lax
from jax.experimental import pallas as pl
from jax.experimental.pallas import tpu as pltpu


def _progressive_down_kernel(p_ref, x_ref, pool_ref, w_ref, b_ref, out_ref, pd_ref):
    _, cin, th, two_w = p_ref.shape          # block: (1, Cin, th, 2W)
    _, cout, _, wo = out_ref.shape           # block: (1, Cout, th, Wo)
    w_in = two_w // 2

    # --- 2x2 average pool -----------------------------------------------------
    # Fold the two H-phases on the VPU (free filler under the DMA-bound regime),
    # then do the 2-tap W pooling as one small MXU matmul with f32 accumulation.
    p = p_ref[0].reshape(cin * th, two_w)                      # free leading-dim merge
    ph = p[:, :w_in] + p[:, w_in:]                             # (Cin*th, W)
    down = jnp.dot(ph, pool_ref[...],
                   preferred_element_type=jnp.float32)         # (Cin*th, Wo)
    down = down.reshape(cin, th, wo)                           # free leading-dim split
    pd_ref[0] = down.astype(pd_ref.dtype)

    # --- 1x1 conv as a direct channel contraction + bias + residual add -------
    w = w_ref[...].astype(jnp.float32)                         # (Cout, Cin)
    h = jnp.broadcast_to(b_ref[...].astype(jnp.float32), (cout, th, wo))
    if cin <= 8:
        # Typical ProgressiveDown case: tiny Cin -> unrolled VPU accumulation
        # (VALU slot has slack in this HBM-bound kernel).
        for c in range(cin):
            h = h + w[:, c:c + 1][:, :, None] * down[c][None, :, :]
    else:
        # TODO(synk): for large Cin an MXU channel-contraction would be better;
        # kept on the VPU (fori_loop) to avoid lane<->sublane relayout reshapes.
        def body(c, acc):
            wc = lax.dynamic_slice_in_dim(w, c, 1, axis=1)         # (Cout, 1)
            dc = lax.dynamic_slice_in_dim(down, c, 1, axis=0)      # (1, th, Wo)
            return acc + wc[:, :, None] * dc
        h = lax.fori_loop(0, cin, body, h)

    out_ref[0] = (x_ref[0].astype(jnp.float32) + h).astype(out_ref.dtype)


def _device_kind():
    try:
        return jax.devices()[0].device_kind.lower()
    except Exception:
        return ""


def _vmem_budget_and_limit(user_budget=None):
    kind = _device_kind()
    if "v7" in kind:                       # 64 MiB physical per TC
        budget, limit = 24 << 20, 40 << 20
    elif ("v5" in kind) or ("v6" in kind):  # 128 MiB physical
        budget, limit = 48 << 20, 64 << 20
    else:                                   # unknown -> conservative
        budget, limit = 24 << 20, 40 << 20
    if user_budget is not None:
        budget = user_budget
        limit = max(limit, min(2 * user_budget, 96 << 20))
    return budget, limit


def _has_two_tensorcores():
    kind = _device_kind()
    return ("v7" in kind) or ("v4" in kind) or ("v5p" in kind)


def _sublane_mult(dtype):
    return {4: 8, 2: 16, 1: 32}.get(jnp.dtype(dtype).itemsize, 8)


def _pick_tile_rows(B, Cin, Cout, Ho, Wo, W, in_dtype, out_dtype,
                    budget_bytes, two_cores):
    """Largest tile height th (dtype-granular divisor of Ho) whose padded,
    double-buffered footprint fits the VMEM budget."""
    step = max(_sublane_mult(in_dtype), _sublane_mult(out_dtype))
    cands = [t for t in range(step, Ho + 1, step) if Ho % t == 0]
    if not cands:
        # Only th == Ho satisfies the (8,128) block constraint when Ho is not a
        # multiple of the sublane granule.
        # TODO(synk): ragged last tile (pl.when-guarded) for large odd Ho.
        cands = [Ho]

    in_sz = jnp.dtype(in_dtype).itemsize
    out_sz = jnp.dtype(out_dtype).itemsize
    lane = lambda n: -(-n // 128) * 128
    sub = lambda t, m: -(-t // m) * m

    def footprint(t):
        tin = sub(t, _sublane_mult(in_dtype))
        tout = sub(t, _sublane_mult(out_dtype))
        # Streamed (double-buffered) blocks, lane/sublane padded.
        streamed = (Cin * tin * lane(2 * W) * in_sz          # prog block
                    + Cout * tout * lane(Wo) * out_sz        # x block
                    + Cout * tout * lane(Wo) * out_sz        # out block
                    + Cin * tin * lane(Wo) * in_sz)          # prog_down block
        # f32 in-kernel intermediates (ph, down, h), single copy.
        temps = 4 * (Cin * tin * lane(W) + Cin * tin * lane(Wo)
                     + Cout * tout * lane(Wo))
        # Tiny grid-invariant operands (pool, weight, bias), double-buffered.
        consts = (sub(W, 8) * lane(Wo) * in_sz
                  + sub(Cout, 8) * lane(Cin) * 4
                  + Cout * 8 * 128 * 4)
        return 2 * streamed + temps + 2 * consts

    fitting = [t for t in cands if footprint(t) <= budget_bytes]
    if not fitting:
        fitting = [min(cands)]            # clamp down rather than overshoot
    if two_cores:
        # v7x/megacore: prefer an even total step count so both cores stay busy.
        even = [t for t in fitting if (B * (Ho // t)) >= 2 and (B * (Ho // t)) % 2 == 0]
        if even:
            return max(even)
    # 1-TC parts: never shrink th just to get more grid steps.
    return max(fitting)


def progressive_down(x_nchw, prog_nchw, weight, bias, *, vmem_budget_bytes=None):
    """x: (B, Cout, H/2, W/2), prog: (B, Cin, H, W) -> (x + conv1x1(down(prog)), down(prog))."""
    B, Cout, Ho, Wo = x_nchw.shape
    Bp, Cin, H, W = prog_nchw.shape
    assert Bp == B and H == 2 * Ho and W == 2 * Wo
    assert weight.shape[0] == Cout and weight.shape[1] == Cin

    budget, vmem_limit = _vmem_budget_and_limit(vmem_budget_bytes)
    th = _pick_tile_rows(B, Cin, Cout, Ho, Wo, W,
                         in_dtype=prog_nchw.dtype, out_dtype=x_nchw.dtype,
                         budget_bytes=budget, two_cores=_has_two_tensorcores())

    # --- free (contiguous) reshapes + tiny constants; no HBM transposes -------
    prog_r = prog_nchw.reshape(B, Cin, Ho, 2 * W)     # lanes: [row 2ho cols | row 2ho+1 cols]
    in_dt = prog_nchw.dtype
    # 2-tap W-phase pooling matrix (the H-phases are pre-summed on the VPU),
    # kept in the input dtype so bf16 feeds the MXU directly.
    pool = (((jnp.arange(W)[:, None] // 2) == jnp.arange(Wo)[None, :])
            .astype(jnp.float32) * 0.25).astype(in_dt)                      # (W, Wo)
    w2 = weight.reshape(Cout, Cin).astype(jnp.float32)                      # (Cout, Cin)
    b3 = bias.reshape(Cout, 1, 1).astype(jnp.float32)                       # (Cout, 1, 1)

    grid = (B, Ho // th)
    tile_map = lambda b, i: (b, 0, i, 0)

    # TODO(synk): for Wo < 128 the (th, Wo) output tiles are lane-padded in VMEM;
    # a lane-dense (1, C, th*Wo) flattened-spatial output layout would need an
    # in-kernel (C*th, Wo)->(C, th*Wo) relayout - left out to keep lowering risk low.
    out, prog_down = pl.pallas_call(
        _progressive_down_kernel,
        out_shape=(jax.ShapeDtypeStruct((B, Cout, Ho, Wo), x_nchw.dtype),
                   jax.ShapeDtypeStruct((B, Cin, Ho, Wo), prog_nchw.dtype)),
        grid_spec=pltpu.PrefetchScalarGridSpec(
            num_scalar_prefetch=0,
            grid=grid,
            in_specs=[
                pl.BlockSpec((1, Cin, th, 2 * W), tile_map),       # prog (packed H-phases)
                pl.BlockSpec((1, Cout, th, Wo), tile_map),         # x (residual)
                pl.BlockSpec((W, Wo), lambda b, i: (0, 0)),        # pool matrix
                pl.BlockSpec((Cout, Cin), lambda b, i: (0, 0)),    # 1x1 conv weight
                pl.BlockSpec((Cout, 1, 1), lambda b, i: (0, 0, 0)),  # bias
            ],
            out_specs=[
                pl.BlockSpec((1, Cout, th, Wo), tile_map),
                pl.BlockSpec((1, Cin, th, Wo), tile_map),
            ],
        ),
        compiler_params=pltpu.CompilerParams(
            dimension_semantics=("parallel", "parallel"),
            vmem_limit_bytes=vmem_limit),
    )(prog_r, x_nchw, pool, w2, b3)
    return out, prog_down


def progressive_down_ref(x, prog, weight, bias):
    """Pure-JAX reference of the PyTorch forward (NCHW, box-filter resampler)."""
    B, Cin, H, W = prog.shape
    Cout = weight.shape[0]
    pd = prog.reshape(B, Cin, H // 2, 2, W // 2, 2).mean(axis=(3, 5))
    h = jnp.einsum('oc,bchw->bohw', weight.reshape(Cout, Cin), pd)
    h = h + bias[None, :, None, None]
    return x + h, pd


if __name__ == "__main__":
    B, Cin, Cout, H, W = 2, 4, 8, 16, 16
    Ho, Wo = H // 2, W // 2

    key = jax.random.PRNGKey(0)
    k_x, k_p, k_w, k_b = jax.random.split(key, 4)

    x = jax.random.normal(k_x, (B, Cout, Ho, Wo), dtype=jnp.float32)
    prog = jax.random.normal(k_p, (B, Cin, H, W), dtype=jnp.float32)

    # Deterministic Conv2d(Cin, Cout, 1) params (PyTorch-style uniform bounds).
    bound = 1.0 / (Cin ** 0.5)
    weight = jax.random.uniform(k_w, (Cout, Cin, 1, 1), jnp.float32, -bound, bound)
    bias = jax.random.uniform(k_b, (Cout,), jnp.float32, -bound, bound)

    out, prog_down = progressive_down(x, prog, weight, bias)
    jax.block_until_ready((out, prog_down))

    out_ref, prog_ref = progressive_down_ref(x, prog, weight, bias)
    assert out.shape == (B, Cout, Ho, Wo) and prog_down.shape == (B, Cin, Ho, Wo)
    assert jnp.allclose(out, out_ref, atol=1e-5, rtol=1e-5)
    assert jnp.allclose(prog_down, prog_ref, atol=1e-5, rtol=1e-5)

    print("KERNEL_OK")
</pallas_src>

<mosaic_0001>
module attributes {stable_mosaic.version = 11 : i64} {
  func.func @_progressive_down_kernel(%arg0: i32, %arg1: i32, %arg2: memref<1x4x8x32xf32, #tpu.memory_space<vmem>>, %arg3: memref<1x8x8x8xf32, #tpu.memory_space<vmem>>, %arg4: memref<16x8xf32, #tpu.memory_space<vmem>>, %arg5: memref<8x4xf32, #tpu.memory_space<vmem>>, %arg6: memref<8x1x1xf32, #tpu.memory_space<vmem>>, %arg7: memref<1x8x8x8xf32, #tpu.memory_space<vmem>>, %arg8: memref<1x4x8x8xf32, #tpu.memory_space<vmem>>) attributes {dimension_semantics = [#tpu.dimension_semantics<parallel>, #tpu.dimension_semantics<parallel>], iteration_bounds = array<i64: 2, 1>, scalar_prefetch = 0 : i64, scratch_operands = 0 : i64, tpu.core_type = #tpu.core_type<tc>, window_params = [{transform_indices = @transform_0, window_bounds = array<i64: 1, 4, 8, 32>}, {transform_indices = @transform_1, window_bounds = array<i64: 1, 8, 8, 8>}, {pipeline_mode = #tpu.pipeline_mode<synchronous>, transform_indices = @transform_2, window_bounds = array<i64: 16, 8>}, {pipeline_mode = #tpu.pipeline_mode<synchronous>, transform_indices = @transform_3, window_bounds = array<i64: 8, 4>}, {pipeline_mode = #tpu.pipeline_mode<synchronous>, transform_indices = @transform_4, window_bounds = array<i64: 8, 1, 1>}, {transform_indices = @transform_5, window_bounds = array<i64: 1, 8, 8, 8>}, {transform_indices = @transform_6, window_bounds = array<i64: 1, 4, 8, 8>}]} {
    %c0 = arith.constant 0 : index
    %c0_0 = arith.constant 0 : index
    %c0_1 = arith.constant 0 : index
    %c0_2 = arith.constant 0 : index
    %0 = vector.load %arg2[%c0, %c0_0, %c0_1, %c0_2] : memref<1x4x8x32xf32, #tpu.memory_space<vmem>>, vector<1x4x8x32xf32>
    %1 = vector.shape_cast %0 : vector<1x4x8x32xf32> to vector<4x8x32xf32>
    %2 = vector.shape_cast %1 : vector<4x8x32xf32> to vector<32x32xf32>
    %3 = vector.extract_strided_slice %2 {offsets = [0, 0], sizes = [32, 16], strides = [1, 1]} : vector<32x32xf32> to vector<32x16xf32>
    %4 = vector.extract_strided_slice %2 {offsets = [0, 16], sizes = [32, 16], strides = [1, 1]} : vector<32x32xf32> to vector<32x16xf32>
    %5 = arith.addf %3, %4 : vector<32x16xf32>
    %c0_3 = arith.constant 0 : index
    %c0_4 = arith.constant 0 : index
    %6 = vector.load %arg4[%c0_3, %c0_4] : memref<16x8xf32, #tpu.memory_space<vmem>>, vector<16x8xf32>
    %cst = arith.constant dense<0.000000e+00> : vector<32x8xf32>
    %7 = tpu.matmul %5, %6, %cst {dimension_numbers = #tpu.dot_dimension_numbers<[1], [0], [0], [1], [0, 0, 1, 1], [], []>} : vector<32x16xf32>, vector<16x8xf32>, vector<32x8xf32> -> vector<32x8xf32>
    %8 = vector.shape_cast %7 : vector<32x8xf32> to vector<4x8x8xf32>
    %c0_5 = arith.constant 0 : index
    %c0_6 = arith.constant 0 : index
    %c0_7 = arith.constant 0 : index
    %c0_8 = arith.constant 0 : index
    %9 = vector.load %arg8[%c0_5, %c0_6, %c0_7, %c0_8] : memref<1x4x8x8xf32, #tpu.memory_space<vmem>>, vector<1x4x8x8xf32>
    %10 = vector.shape_cast %9 : vector<1x4x8x8xf32> to vector<4x8x8xf32>
    %11 = vector.shape_cast %8 : vector<4x8x8xf32> to vector<1x4x8x8xf32>
    tpu.vector_store %arg8[%c0_5, %c0_6, %c0_7, %c0_8], %11 {strides = array<i32>} : memref<1x4x8x8xf32, #tpu.memory_space<vmem>>, vector<1x4x8x8xf32>,
    %c0_9 = arith.constant 0 : index
    %c0_10 = arith.constant 0 : index
    %12 = vector.load %arg5[%c0_9, %c0_10] : memref<8x4xf32, #tpu.memory_space<vmem>>, vector<8x4xf32>
    %c0_11 = arith.constant 0 : index
    %c0_12 = arith.constant 0 : index
    %c0_13 = arith.constant 0 : index
    %13 = vector.load %arg6[%c0_11, %c0_12, %c0_13] : memref<8x1x1xf32, #tpu.memory_space<vmem>>, vector<8x1x1xf32>
    %14 = vector.shape_cast %13 : vector<8x1x1xf32> to vector<8x1x1xf32>
    %15 = vector.broadcast %14 : vector<8x1x1xf32> to vector<8x8x8xf32>
    %16 = vector.extract_strided_slice %12 {offsets = [0, 0], sizes = [8, 1], strides = [1, 1]} : vector<8x4xf32> to vector<8x1xf32>
    %17 = vector.shape_cast %16 : vector<8x1xf32> to vector<8x1x1xf32>
    %18 = vector.extract_strided_slice %8 {offsets = [0, 0, 0], sizes = [1, 8, 8], strides = [1, 1, 1]} : vector<4x8x8xf32> to vector<1x8x8xf32>
    %19 = vector.shape_cast %18 : vector<1x8x8xf32> to vector<8x8xf32>
    %20 = vector.shape_cast %19 : vector<8x8xf32> to vector<1x8x8xf32>
    %21 = vector.broadcast %17 : vector<8x1x1xf32> to vector<8x8x8xf32>
    %22 = vector.broadcast %20 : vector<1x8x8xf32> to vector<8x8x8xf32>
    %23 = arith.mulf %21, %22 : vector<8x8x8xf32>
    %24 = arith.addf %15, %23 : vector<8x8x8xf32>
    %25 = vector.extract_strided_slice %12 {offsets = [0, 1], sizes = [8, 1], strides = [1, 1]} : vector<8x4xf32> to vector<8x1xf32>
    %26 = vector.shape_cast %25 : vector<8x1xf32> to vector<8x1x1xf32>
    %27 = vector.extract_strided_slice %8 {offsets = [1, 0, 0], sizes = [1, 8, 8], strides = [1, 1, 1]} : vector<4x8x8xf32> to vector<1x8x8xf32>
    %28 = vector.shape_cast %27 : vector<1x8x8xf32> to vector<8x8xf32>
    %29 = vector.shape_cast %28 : vector<8x8xf32> to vector<1x8x8xf32>
    %30 = vector.broadcast %26 : vector<8x1x1xf32> to vector<8x8x8xf32>
    %31 = vector.broadcast %29 : vector<1x8x8xf32> to vector<8x8x8xf32>
    %32 = arith.mulf %30, %31 : vector<8x8x8xf32>
    %33 = arith.addf %24, %32 : vector<8x8x8xf32>
    %34 = vector.extract_strided_slice %12 {offsets = [0, 2], sizes = [8, 1], strides = [1, 1]} : vector<8x4xf32> to vector<8x1xf32>
    %35 = vector.shape_cast %34 : vector<8x1xf32> to vector<8x1x1xf32>
    %36 = vector.extract_strided_slice %8 {offsets = [2, 0, 0], sizes = [1, 8, 8], strides = [1, 1, 1]} : vector<4x8x8xf32> to vector<1x8x8xf32>
    %37 = vector.shape_cast %36 : vector<1x8x8xf32> to vector<8x8xf32>
    %38 = vector.shape_cast %37 : vector<8x8xf32> to vector<1x8x8xf32>
    %39 = vector.broadcast %35 : vector<8x1x1xf32> to vector<8x8x8xf32>
    %40 = vector.broadcast %38 : vector<1x8x8xf32> to vector<8x8x8xf32>
    %41 = arith.mulf %39, %40 : vector<8x8x8xf32>
    %42 = arith.addf %33, %41 : vector<8x8x8xf32>
    %43 = vector.extract_strided_slice %12 {offsets = [0, 3], sizes = [8, 1], strides = [1, 1]} : vector<8x4xf32> to vector<8x1xf32>
    %44 = vector.shape_cast %43 : vector<8x1xf32> to vector<8x1x1xf32>
    %45 = vector.extract_strided_slice %8 {offsets = [3, 0, 0], sizes = [1, 8, 8], strides = [1, 1, 1]} : vector<4x8x8xf32> to vector<1x8x8xf32>
    %46 = vector.shape_cast %45 : vector<1x8x8xf32> to vector<8x8xf32>
    %47 = vector.shape_cast %46 : vector<8x8xf32> to vector<1x8x8xf32>
    %48 = vector.broadcast %44 : vector<8x1x1xf32> to vector<8x8x8xf32>
    %49 = vector.broadcast %47 : vector<1x8x8xf32> to vector<8x8x8xf32>
    %50 = arith.mulf %48, %49 : vector<8x8x8xf32>
    %51 = arith.addf %42, %50 : vector<8x8x8xf32>
    %c0_14 = arith.constant 0 : index
    %c0_15 = arith.constant 0 : index
    %c0_16 = arith.constant 0 : index
    %c0_17 = arith.constant 0 : index
    %52 = vector.load %arg3[%c0_14, %c0_15, %c0_16, %c0_17] : memref<1x8x8x8xf32, #tpu.memory_space<vmem>>, vector<1x8x8x8xf32>
    %53 = vector.shape_cast %52 : vector<1x8x8x8xf32> to vector<8x8x8xf32>
    %54 = arith.addf %53, %51 : vector<8x8x8xf32>
    %c0_18 = arith.constant 0 : index
    %c0_19 = arith.constant 0 : index
    %c0_20 = arith.constant 0 : index
    %c0_21 = arith.constant 0 : index
    %55 = vector.load %arg7[%c0_18, %c0_19, %c0_20, %c0_21] : memref<1x8x8x8xf32, #tpu.memory_space<vmem>>, vector<1x8x8x8xf32>
    %56 = vector.shape_cast %55 : vector<1x8x8x8xf32> to vector<8x8x8xf32>
    %57 = vector.shape_cast %54 : vector<8x8x8xf32> to vector<1x8x8x8xf32>
    tpu.vector_store %arg7[%c0_18, %c0_19, %c0_20, %c0_21], %57 {strides = array<i32>} : memref<1x8x8x8xf32, #tpu.memory_space<vmem>>, vector<1x8x8x8xf32>,
    return
  }
  func.func @transform_0(%arg0: i32, %arg1: i32) -> (i32, i32, i32, i32) {
    %c0_i32 = arith.constant 0 : i32
    %c0_i32_0 = arith.constant 0 : i32
    %c0_i32_1 = arith.constant 0 : i32
    return %arg0, %c0_i32, %arg1, %c0_i32_0 : i32, i32, i32, i32
  }
  func.func @transform_1(%arg0: i32, %arg1: i32) -> (i32, i32, i32, i32) {
    %c0_i32 = arith.constant 0 : i32
    %c0_i32_0 = arith.constant 0 : i32
    %c0_i32_1 = arith.constant 0 : i32
    return %arg0, %c0_i32, %arg1, %c0_i32_0 : i32, i32, i32, i32
  }
  func.func @transform_2(%arg0: i32, %arg1: i32) -> (i32, i32) {
    %c0_i32 = arith.constant 0 : i32
    %c0_i32_0 = arith.constant 0 : i32
    %c0_i32_1 = arith.constant 0 : i32
    return %c0_i32, %c0_i32_0 : i32, i32
  }
  func.func @transform_3(%arg0: i32, %arg1: i32) -> (i32, i32) {
    %c0_i32 = arith.constant 0 : i32
    %c0_i32_0 = arith.constant 0 : i32
    %c0_i32_1 = arith.constant 0 : i32
    return %c0_i32, %c0_i32_0 : i32, i32
  }
  func.func @transform_4(%arg0: i32, %arg1: i32) -> (i32, i32, i32) {
    %c0_i32 = arith.constant 0 : i32
    %c0_i32_0 = arith.constant 0 : i32
    %c0_i32_1 = arith.constant 0 : i32
    %c0_i32_2 = arith.constant 0 : i32
    return %c0_i32, %c0_i32_0, %c0_i32_1 : i32, i32, i32
  }
  func.func @transform_5(%arg0: i32, %arg1: i32) -> (i32, i32, i32, i32) {
    %c0_i32 = arith.constant 0 : i32
    %c0_i32_0 = arith.constant 0 : i32
    %c0_i32_1 = arith.constant 0 : i32
    return %arg0, %c0_i32, %arg1, %c0_i32_0 : i32, i32, i32, i32
  }
  func.func @transform_6(%arg0: i32, %arg1: i32) -> (i32, i32, i32, i32) {
    %c0_i32 = arith.constant 0 : i32
    %c0_i32_0 = arith.constant 0 : i32
    %c0_i32_1 = arith.constant 0 : i32
    return %arg0, %c0_i32, %arg1, %c0_i32_0 : i32, i32, i32, i32
  }
}

</mosaic_0001>

<llo_original>
// kernel: tpu_custom_call.1
$region0: #{tpu_custom_call.1}
  #allocation0 [shape = 'u32[]', space=smem, size = 0x4, offset = 0x4, fixed_abs, tag = 'smem constant byte address 0x4 - core index']
  #allocation1 [shape = 'u32[144,128]{1,0:T(1,128)}', space=vmem, size = 0x12000, scoped, tag = 'internal scratch']
  %s0 = inlined_call_operand.hbm [shape: f32[2,4,8,32], index: 0, kind: input, shape index: {}]
  %s1 = inlined_call_operand.hbm [shape: f32[2,8,8,8], index: 1, kind: input, shape index: {}]
  %s2 = inlined_call_operand.vmem [shape: f32[16,8], index: 2, kind: input, shape index: {}]
  %s3 = inlined_call_operand.vmem [shape: f32[8,4], index: 3, kind: input, shape index: {}]
  %s4 = inlined_call_operand.vmem [shape: f32[8,1,1], index: 4, kind: input, shape index: {}]
  %s5 = inlined_call_operand.hbm [shape: f32[2,8,8,8], index: 5, kind: output, shape index: {0}]
  %s6 = inlined_call_operand.hbm [shape: f32[2,4,8,8], index: 6, kind: output, shape index: {1}]
  %7 = xla_tuple %s5, %s6
  %s8 = sld [smem:[#allocation0]]
  $region69: #{tpu_custom_call.1} parent=0
    _
  %s10 = ssub.s32 1, %s8
  %s11 = scalar_select 0, %s10, %s8
  $region1: #{tpu_custom_call.1} parent=0
    #allocation2 [shape = 'u8[32768]{0}', space=vmem, size = 0x8000, scoped, tag = 'input window, operand 0']
    #allocation3 [shape = 's32[2]{0}', space=sflag, size = 0x8, scoped, tag = 'scoped memory for tpu_custom_call.1']
    #allocation4 [shape = 's32[2]{0}', space=sflag, size = 0x8, scoped, tag = 'scoped memory for tpu_custom_call.1']
    #allocation5 [shape = 'u8[65536]{0}', space=vmem, size = 0x10000, scoped, tag = 'input window, operand 1']
    #allocation6 [shape = 's32[2]{0}', space=sflag, size = 0x8, scoped, tag = 'scoped memory for tpu_custom_call.1']
    #allocation7 [shape = 'u8[65536]{0}', space=vmem, size = 0x10000, scoped, tag = 'output window, operand 0']
    #allocation8 [shape = 'u8[32768]{0}', space=vmem, size = 0x8000, scoped, tag = 'output window, operand 1']
    #allocation9 [shape = 's32[2]{0}', space=sflag, size = 0x8, scoped, tag = 'scoped memory for tpu_custom_call.1']
    %12 = vsyncpa [#allocation3], 0
    %s13 = scalar_lea.sflag [#allocation3], 1
    %14 = vsyncpa %s13, 0
    %15 = vsyncpa [#allocation6], 0
    %s16 = scalar_lea.sflag [#allocation6], 1
    %17 = vsyncpa %s16, 0
    %18 = vsyncpa [#allocation4], 0
    %s19 = scalar_lea.sflag [#allocation4], 1
    %20 = vsyncpa %s19, 0
    %21 = vsyncpa [#allocation9], 0
    %s22 = scalar_lea.sflag [#allocation9], 1
    %23 = vsyncpa %s22, 0
    loop: start=0, step=1, limit=4
    $region2: #{tpu_custom_call.1} parent=1 // loop_pre_header
      _
    $region3: #{tpu_custom_call.1} parent=1 // loop_header
      %s25 = sphi 0, %s29
      %p26 = scmp.ge.s32.totalorder %s25, 4
      %s32 = sphi 0, %s44
      %s33 = sphi 0, %s40
      %s34 = sphi 0, %s32
      %s35 = sphi 0, %s33
      %s36 = sphi 0, %s34
      %s37 = sphi 0, %s35
      %s49 = sphi 0, %s51
      %s52 = sphi 0, %s49
      %s53 = sphi 0, %s52
      %s69 = sphi 0, %s53
      %s77 = sphi 0, %s79
      %s80 = sphi 0, %s77
      %s81 = sphi 0, %s80
      %s97 = sphi 0, %s81
      %s101 = sphi 0, %s101
      %s103 = sphi 0, %s101
      %s104 = sphi 0, %s103
      %s118 = sphi 0, %s104
      %s122 = sphi 0, %s122
      %s124 = sphi 0, %s122
      %s125 = sphi 0, %s124
      %s139 = sphi 0, %s125
      %s143 = sphi 0, %s143
      %s145 = sphi 0, %s143
      %s146 = sphi 0, %s145
      %s160 = sphi 0, %s146
      %s168 = sphi 0, %s170
      %s171 = sphi 0, %s168
      %s172 = sphi 0, %s171
      %s188 = sphi 0, %s172
      %s196 = sphi 0, %s198
      %s199 = sphi 0, %s196
      %s200 = sphi 0, %s199
      %s216 = sphi 0, %s200
    $region4: #{tpu_custom_call.1} parent=1 // loop_header_branch
      %28 = sbr.rel (%p26) target = $region8
    $region5: #{tpu_custom_call.1} parent=1 // loop_body
      %s30 = ssub.s32 %s25, 1
      %s31 = ssub.s32 %s25, 2
      %s38 = sadd.s32 1, %s33
      %p39 = scmp.ge.s32.totalorder %s38, 1
      %s40 = scalar_select %p39, 0, %s38
      %s41 = sadd.s32 1, %s32
      %s42 = scalar_select %p39, %s41, %s32
      %p43 = scmp.ge.s32.totalorder %s42, 2
      %s44 = scalar_select %p43, 0, %s42
      %s45 = ssub.s32 %s32, %s44
      %s46 = ssub.s32 %s33, %s40
      %s47 = sor.u32 %s45, %s46
      %p48 = scmp.eq.s32.totalorder %s47, 0
      %s50 = sadd.s32 %s49, 1
      %s51 = scalar_select %p48, %s49, %s50
      %p54 = pneg %p48
      %p55 = scmp.eq.s32.totalorder %s25, 1
      %p56 = por %p54, %p55
      %p57 = scmp.ne.s32.totalorder %s49, %s52
      %p58 = scmp.eq.s32.totalorder %s25, 0
      %p59 = por %p57, %p58
      %p60 = scmp.ne.s32.totalorder %s49, %s52
      %p61 = scmp.eq.s32.totalorder %s30, 1
      %p62 = por %p60, %p61
      %p63 = scmp.ne.s32.totalorder %s52, %s53
      %p64 = scmp.eq.s32.totalorder %s30, 0
      %p65 = por %p63, %p64
      %p66 = scmp.ne.s32.totalorder %s52, %s53
      %p67 = scmp.eq.s32.totalorder %s31, 1
      %p68 = por %p66, %p67
      %p70 = scmp.ne.s32.totalorder %s53, %s69
      %p71 = scmp.eq.s32.totalorder %s31, 0
      %p72 = por %p70, %p71
      %s73 = ssub.s32 %s32, %s44
      %s74 = ssub.s32 %s33, %s40
      %s75 = sor.u32 %s73, %s74
      %p76 = scmp.eq.s32.totalorder %s75, 0
      %s78 = sadd.s32 %s77, 1
      %s79 = scalar_select %p76, %s77, %s78
      %p82 = pneg %p76
      %p83 = scmp.eq.s32.totalorder %s25, 1
      %p84 = por %p82, %p83
      %p85 = scmp.ne.s32.totalorder %s77, %s80
      %p86 = scmp.eq.s32.totalorder %s25, 0
      %p87 = por %p85, %p86
      %p88 = scmp.ne.s32.totalorder %s77, %s80
      %p89 = scmp.eq.s32.totalorder %s30, 1
      %p90 = por %p88, %p89
      %p91 = scmp.ne.s32.totalorder %s80, %s81
      %p92 = scmp.eq.s32.totalorder %s30, 0
      %p93 = por %p91, %p92
      %p94 = scmp.ne.s32.totalorder %s80, %s81
      %p95 = scmp.eq.s32.totalorder %s31, 1
      %p96 = por %p94, %p95
      %p98 = scmp.ne.s32.totalorder %s81, %s97
      %p99 = scmp.eq.s32.totalorder %s31, 0
      %p100 = por %p98, %p99
      %s102 = sadd.s32 %s101, 1
      %p105 = scmp.eq.s32.totalorder %s25, 1
      %p106 = scmp.ne.s32.totalorder %s101, %s103
      %p107 = scmp.eq.s32.totalorder %s25, 0
      %p108 = por %p106, %p107
      %p109 = scmp.ne.s32.totalorder %s101, %s103
      %p110 = scmp.eq.s32.totalorder %s30, 1
      %p111 = por %p109, %p110
      %p112 = scmp.ne.s32.totalorder %s103, %s104
      %p113 = scmp.eq.s32.totalorder %s30, 0
      %p114 = por %p112, %p113
      %p115 = scmp.ne.s32.totalorder %s103, %s104
      %p116 = scmp.eq.s32.totalorder %s31, 1
      %p117 = por %p115, %p116
      %p119 = scmp.ne.s32.totalorder %s104, %s118
      %p120 = scmp.eq.s32.totalorder %s31, 0
      %p121 = por %p119, %p120
      %s123 = sadd.s32 %s122, 1
      %p126 = scmp.eq.s32.totalorder %s25, 1
      %p127 = scmp.ne.s32.totalorder %s122, %s124
      %p128 = scmp.eq.s32.totalorder %s25, 0
      %p129 = por %p127, %p128
      %p130 = scmp.ne.s32.totalorder %s122, %s124
      %p131 = scmp.eq.s32.totalorder %s30, 1
      %p132 = por %p130, %p131
      %p133 = scmp.ne.s32.totalorder %s124, %s125
      %p134 = scmp.eq.s32.totalorder %s30, 0
      %p135 = por %p133, %p134
      %p136 = scmp.ne.s32.totalorder %s124, %s125
      %p137 = scmp.eq.s32.totalorder %s31, 1
      %p138 = por %p136, %p137
      %p140 = scmp.ne.s32.totalorder %s125, %s139
      %p141 = scmp.eq.s32.totalorder %s31, 0
      %p142 = por %p140, %p141
      %s144 = sadd.s32 %s143, 1
      %p147 = scmp.eq.s32.totalorder %s25, 1
      %p148 = scmp.ne.s32.totalorder %s143, %s145
      %p149 = scmp.eq.s32.totalorder %s25, 0
      %p150 = por %p148, %p149
      %p151 = scmp.ne.s32.totalorder %s143, %s145
      %p152 = scmp.eq.s32.totalorder %s30, 1
      %p153 = por %p151, %p152
      %p154 = scmp.ne.s32.totalorder %s145, %s146
      %p155 = scmp.eq.s32.totalorder %s30, 0
      %p156 = por %p154, %p155
      %p157 = scmp.ne.s32.totalorder %s145, %s146
      %p158 = scmp.eq.s32.totalorder %s31, 1
      %p159 = por %p157, %p158
      %p161 = scmp.ne.s32.totalorder %s146, %s160
      %p162 = scmp.eq.s32.totalorder %s31, 0
      %p163 = por %p161, %p162
      %s164 = ssub.s32 %s32, %s44
      %s165 = ssub.s32 %s33, %s40
      %s166 = sor.u32 %s164, %s165
      %p167 = scmp.eq.s32.totalorder %s166, 0
      %s169 = sadd.s32 %s168, 1
      %s170 = scalar_select %p167, %s168, %s169
      %p173 = pneg %p167
      %p174 = scmp.eq.s32.totalorder %s25, 1
      %p175 = por %p173, %p174
      %p176 = scmp.ne.s32.totalorder %s168, %s171
      %p177 = scmp.eq.s32.totalorder %s25, 0
      %p178 = por %p176, %p177
      %p179 = scmp.ne.s32.totalorder %s168, %s171
      %p180 = scmp.eq.s32.totalorder %s30, 1
      %p181 = por %p179, %p180
      %p182 = scmp.ne.s32.totalorder %s171, %s172
      %p183 = scmp.eq.s32.totalorder %s30, 0
      %p184 = por %p182, %p183
      %p185 = scmp.ne.s32.totalorder %s171, %s172
      %p186 = scmp.eq.s32.totalorder %s31, 1
      %p187 = por %p185, %p186
      %p189 = scmp.ne.s32.totalorder %s172, %s188
      %p190 = scmp.eq.s32.totalorder %s31, 0
      %p191 = por %p189, %p190
      %s192 = ssub.s32 %s32, %s44
      %s193 = ssub.s32 %s33, %s40
      %s194 = sor.u32 %s192, %s193
      %p195 = scmp.eq.s32.totalorder %s194, 0
      %s197 = sadd.s32 %s196, 1
      %s198 = scalar_select %p195, %s196, %s197
      %p201 = pneg %p195
      %p202 = scmp.eq.s32.totalorder %s25, 1
      %p203 = por %p201, %p202
      %p204 = scmp.ne.s32.totalorder %s196, %s199
      %p205 = scmp.eq.s32.totalorder %s25, 0
      %p206 = por %p204, %p205
      %p207 = scmp.ne.s32.totalorder %s196, %s199
      %p208 = scmp.eq.s32.totalorder %s30, 1
      %p209 = por %p207, %p208
      %p210 = scmp.ne.s32.totalorder %s199, %s200
      %p211 = scmp.eq.s32.totalorder %s30, 0
      %p212 = por %p210, %p211
      %p213 = scmp.ne.s32.totalorder %s199, %s200
      %p214 = scmp.eq.s32.totalorder %s31, 1
      %p215 = por %p213, %p214
      %p217 = scmp.ne.s32.totalorder %s200, %s216
      %p218 = scmp.eq.s32.totalorder %s31, 0
      %p219 = por %p217, %p218
      %p220 = scmp.le.s32.totalorder 1, %s25
      %p221 = scmp.lt.s32.totalorder %s25, 3
      %p222 = pnand %p220, %p221
      %p223 = pneg %p222
      // Predicated region
      $region9: #{tpu_custom_call.1} parent=5 // pred_check
        _
      $region10: #{tpu_custom_call.1} parent=5 // pred_check_branch
        %225 = sbr.rel (%p222) target = $region12
      $region11: #{tpu_custom_call.1} parent=5 // pred_region
        %s226 = ssub.s32 %s25, 1
        // Predicated region
        $region13: #{tpu_custom_call.1} parent=11 // pred_check
          %p227 = pneg %p114
        $region14: #{tpu_custom_call.1} parent=11 // pred_check_branch
          %229 = sbr.rel (%p227) target = $region16
        $region15: #{tpu_custom_call.1} parent=11 // pred_region
          _
        $region16: #{tpu_custom_call.1} parent=11 // pred_fallthru
          _
        // Predicated region
        $region17: #{tpu_custom_call.1} parent=11 // pred_check
          %p230 = pneg %p135
        $region18: #{tpu_custom_call.1} parent=11 // pred_check_branch
          %232 = sbr.rel (%p230) target = $region20
        $region19: #{tpu_custom_call.1} parent=11 // pred_region
          _
        $region20: #{tpu_custom_call.1} parent=11 // pred_fallthru
          _
        // Predicated region
        $region21: #{tpu_custom_call.1} parent=11 // pred_check
          %p233 = pneg %p156
        $region22: #{tpu_custom_call.1} parent=11 // pred_check_branch
          %235 = sbr.rel (%p233) target = $region24
        $region23: #{tpu_custom_call.1} parent=11 // pred_region
          _
        $region24: #{tpu_custom_call.1} parent=11 // pred_fallthru
          _
      $region12: #{tpu_custom_call.1} parent=5 // pred_fallthru
        _
      %p236 = scmp.lt.s32.totalorder %s25, 2
      // Predicated region
      $region25: #{tpu_custom_call.1} parent=5 // pred_check
        %p237 = pneg %p236
      $region26: #{tpu_custom_call.1} parent=5 // pred_check_branch
        %239 = sbr.rel (%p237) target = $region28
      $region27: #{tpu_custom_call.1} parent=5 // pred_region
        // Predicated region
        $region29: #{tpu_custom_call.1} parent=27 // pred_check
          %p240 = pneg %p59
        $region30: #{tpu_custom_call.1} parent=27 // pred_check_branch
          %242 = sbr.rel (%p240) target = $region32
        $region31: #{tpu_custom_call.1} parent=27 // pred_region
          %s243 = sand.u32 %s49, 1
          %s244 = scalar_lea.sflag [#allocation3], %s243
          %s245 = sand.u32 %s49, 1
          %s246 = smul.addr %s245, 32
          %s247 = scalar_lea.vmem [#allocation2], %s246
          %s249 = ssub.s32 512, 512
          %250 = vsyncadd %s244, %s249
          %s251 = smul.addr %s32, 4
          %s252 = sadd.s32 %s33, %s251
          %s253 = smul.addr %s252, 128
          %s254 = scalar_lea.hbm %s0, %s253
          %s255 = sshll.u32 %s247, 4
          %s256 = int_to_ptr.vmem [resolvable:$true] %s255
          %261 = dma.hbm_to_vmem [thread:$0]  %s254, 512, %s256, %s244, 128, 128, 8
        $region32: #{tpu_custom_call.1} parent=27 // pred_fallthru
          _
        // Predicated region
        $region33: #{tpu_custom_call.1} parent=27 // pred_check
          %p262 = pneg %p87
        $region34: #{tpu_custom_call.1} parent=27 // pred_check_branch
          %264 = sbr.rel (%p262) target = $region36
        $region35: #{tpu_custom_call.1} parent=27 // pred_region
          %s265 = sand.u32 %s77, 1
          %s266 = scalar_lea.sflag [#allocation6], %s265
          %s267 = sand.u32 %s77, 1
          %s268 = smul.addr %s267, 64
          %s269 = scalar_lea.vmem [#allocation5], %s268
          %s271 = ssub.s32 1024, 1024
          %272 = vsyncadd %s266, %s271
          %s273 = smul.addr %s32, 8
          %s274 = sadd.s32 %s33, %s273
          %s275 = smul.addr %s274, 128
          %s276 = scalar_lea.hbm %s1, %s275
          %s277 = sshll.u32 %s269, 4
          %s278 = int_to_ptr.vmem [resolvable:$true] %s277
          %283 = dma.hbm_to_vmem [thread:$0]  %s276, 1024, %s278, %s266, 128, 128, 8
        $region36: #{tpu_custom_call.1} parent=27 // pred_fallthru
          _
      $region28: #{tpu_custom_call.1} parent=5 // pred_fallthru
        _
      %p284 = scmp.le.s32.totalorder 1, %s25
      %p285 = scmp.lt.s32.totalorder %s25, 3
      %p286 = pnand %p284, %p285
      %p287 = pneg %p286
      // Predicated region
      $region37: #{tpu_custom_call.1} parent=5 // pred_check
        _
      $region38: #{tpu_custom_call.1} parent=5 // pred_check_branch
        %289 = sbr.rel (%p286) target = $region40
      $region39: #{tpu_custom_call.1} parent=5 // pred_region
        %s290 = ssub.s32 %s25, 1
        %s291 = sand.u32 %s52, 1
        %s292 = scalar_lea.sflag [#allocation3], %s291
        %s293 = sand.u32 %s52, 1
        %s294 = smul.addr %s293, 32
        %s295 = scalar_lea.vmem [#allocation2], %s294
        // Predicated region
        $region41: #{tpu_custom_call.1} parent=39 // pred_check
          %p296 = pneg %p65
        $region42: #{tpu_custom_call.1} parent=39 // pred_check_branch
          %298 = sbr.rel (%p296) target = $region44
        $region43: #{tpu_custom_call.1} parent=39 // pred_region
          %299 = dma.done %s292, 512
        $region44: #{tpu_custom_call.1} parent=39 // pred_fallthru
          _
        %s300 = sand.u32 %s80, 1
        %s301 = scalar_lea.sflag [#allocation6], %s300
        %s302 = sand.u32 %s80, 1
        %s303 = smul.addr %s302, 64
        %s304 = scalar_lea.vmem [#allocation5], %s303
        // Predicated region
        $region45: #{tpu_custom_call.1} parent=39 // pred_check
          %p305 = pneg %p93
        $region46: #{tpu_custom_call.1} parent=39 // pred_check_branch
          %307 = sbr.rel (%p305) target = $region48
        $region47: #{tpu_custom_call.1} parent=39 // pred_region
          %308 = dma.done %s301, 1024
        $region48: #{tpu_custom_call.1} parent=39 // pred_fallthru
          _
        %s309 = sand.u32 %s52, 1
        %s310 = scalar_lea.sflag [#allocation3], %s309
        %s311 = sand.u32 %s52, 1
        %s312 = smul.addr %s311, 32
        %s313 = scalar_lea.vmem [#allocation2], %s312
        %p314 = pneg %p65
        %p315 = pneg %p62
        %s316 = sand.u32 %s80, 1
        %s317 = scalar_lea.sflag [#allocation6], %s316
        %s318 = sand.u32 %s80, 1
        %s319 = smul.addr %s318, 64
        %s320 = scalar_lea.vmem [#allocation5], %s319
        %p321 = pneg %p93
        %p322 = pneg %p90
        %p323 = pneg %p114
        %p324 = pneg %p111
        %p325 = pneg %p135
        %p326 = pneg %p132
        %p327 = pneg %p156
        %p328 = pneg %p153
        %p329 = pneg %p184
        %p330 = pneg %p181
        %s331 = sand.u32 %s171, 1
        %s332 = scalar_lea.sflag [#allocation4], %s331
        %s333 = sand.u32 %s171, 1
        %s334 = smul.addr %s333, 64
        %s335 = scalar_lea.vmem [#allocation7], %s334
        %p336 = pneg %p212
        %p337 = pneg %p209
        %s338 = sand.u32 %s199, 1
        %s339 = scalar_lea.sflag [#allocation9], %s338
        %s340 = sand.u32 %s199, 1
        %s341 = smul.addr %s340, 32
        %s342 = scalar_lea.vmem [#allocation8], %s341
        %v343 = vld [vmem:[%s295] sm:$0xff]
        %v344 = vld [vmem:[%s295 + $0x8] sm:$0xff]
        %v345 = vld [vmem:[%s295 + $0x10] sm:$0xff]
        %v346 = vld [vmem:[%s295 + $0x18] sm:$0xff]
        %351 = vrot.lane.b32.xlu0 %v343, 112
        %v352 = vpop.permute.xlu0 %351
        %353 = vrot.lane.b32.xlu0 %v344, 112
        %v354 = vpop.permute.xlu0 %353
        %355 = vrot.lane.b32.xlu0 %v345, 112
        %v356 = vpop.permute.xlu0 %355
        %357 = vrot.lane.b32.xlu0 %v346, 112
        %v358 = vpop.permute.xlu0 %357
        %v363 = vadd.f32 %v343, %v352
        %v364 = vadd.f32 %v344, %v354
        %v365 = vadd.f32 %v345, %v356
        %v366 = vadd.f32 %v346, %v358
        %v367 = vld [vmem:[%s2] sm:$0xff]
        %v368 = vld [vmem:[%s2 + $0x8] sm:$0xff]
        %vm369 = vcmask 130048
        %v371 = vsel %vm369, %v363, 0
        %v374 = vsel %vm369, %v364, 0
        %v377 = vsel %vm369, %v365, 0
        %v380 = vsel %vm369, %v366, 0
        %382 = vmatprep.subr.mxu0 0.0
        %383 = vmatpush1.msra.mxu0 0.0
        %384 = vmatprep.subr.mxu0 0.0
        %385 = vmatpush1.msra.mxu0 0.0
        %386 = vmatprep.subr.mxu0 0.0
        %387 = vmatpush1.msra.mxu0 0.0
        %388 = vmatprep.subr.mxu0 0.0
        %389 = vmatpush1.msra.mxu0 0.0
        %390 = vmatprep.subr.mxu0 0.0
        %391 = vmatpush1.msra.mxu0 0.0
        %392 = vmatprep.subr.mxu0 0.0
        %393 = vmatpush1.msra.mxu0 0.0
        %394 = vmatprep.subr.mxu0 0.0
        %395 = vmatpush1.msra.mxu0 0.0
        %396 = vmatprep.subr.mxu0 0.0
        %397 = vmatpush1.msra.mxu0 0.0
        %398 = vmatprep.subr.mxu0 0.0
        %399 = vmatpush1.msra.mxu0 0.0
        %400 = vmatprep.subr.mxu0 0.0
        %401 = vmatpush1.msra.mxu0 0.0
        %402 = vmatprep.subr.mxu0 0.0
        %403 = vmatpush1.msra.mxu0 0.0
        %404 = vmatprep.subr.mxu0 0.0
        %405 = vmatpush1.msra.mxu0 0.0
        %406 = vmatprep.subr.mxu0 0.0
        %407 = vmatpush1.msra.mxu0 0.0
        %408 = vmatprep.subr.mxu0 0.0
        %409 = vmatpush1.msra.mxu0 0.0
        %410 = vmatprep.subr.mxu0 0.0
        %411 = vmatpush1.msra.mxu0 %v368
        %412 = vmatprep.subr.mxu0 0.0
        %413 = vmatpush1.msra.mxu0 %v367
        %414 = vmatprep.subr.mxu0 0.0
        %415 = vmatpush2.msra.mxu0 0.0
        %416 = vmatprep.subr.mxu0 0.0
        %417 = vmatpush2.msra.mxu0 0.0
        %418 = vmatprep.subr.mxu0 0.0
        %419 = vmatpush2.msra.mxu0 0.0
        %420 = vmatprep.subr.mxu0 0.0
        %421 = vmatpush2.msra.mxu0 0.0
        %422 = vmatprep.subr.mxu0 0.0
        %423 = vmatpush2.msra.mxu0 0.0
        %424 = vmatprep.subr.mxu0 0.0
        %425 = vmatpush2.msra.mxu0 0.0
        %426 = vmatprep.subr.mxu0 0.0
        %427 = vmatpush2.msra.mxu0 0.0
        %428 = vmatprep.subr.mxu0 0.0
        %429 = vmatpush2.msra.mxu0 0.0
        %430 = vmatprep.subr.mxu0 0.0
        %431 = vmatpush2.msra.mxu0 0.0
        %432 = vmatprep.subr.mxu0 0.0
        %433 = vmatpush2.msra.mxu0 0.0
        %434 = vmatprep.subr.mxu0 0.0
        %435 = vmatpush2.msra.mxu0 0.0
        %436 = vmatprep.subr.mxu0 0.0
        %437 = vmatpush2.msra.mxu0 0.0
        %438 = vmatprep.subr.mxu0 0.0
        %439 = vmatpush2.msra.mxu0 0.0
        %440 = vmatprep.subr.mxu0 0.0
        %441 = vmatpush2.msra.mxu0 0.0
        %442 = vmatprep.subr.mxu0 0.0
        %443 = vmatpush2.msra.mxu0 0.0
        %444 = vmatprep.subr.mxu0 0.0
        %445 = vmatpush2.msra.mxu0 0.0
        %446 = vmatprep.mubr.f32.mxu0 0.0
        %447 = vmatmul.mubr.f32.gmra.mxu0 %v371
        %v448 = vpop.f32.mrf.mxu0
        %v449 = vadd.f32 0.0, %v448
        %v450 = vpop.f32.mrf.mxu0
        %451 = vmatprep.mubr.f32.mxu0 0.0
        %452 = vmatmul.mubr.f32.gmra.mxu0 %v374
        %v453 = vpop.f32.mrf.mxu0
        %v454 = vadd.f32 0.0, %v453
        %v455 = vpop.f32.mrf.mxu0
        %456 = vmatprep.mubr.f32.mxu0 0.0
        %457 = vmatmul.mubr.f32.gmra.mxu0 %v377
        %v458 = vpop.f32.mrf.mxu0
        %v459 = vadd.f32 0.0, %v458
        %v460 = vpop.f32.mrf.mxu0
        %461 = vmatprep.mubr.f32.mxu0 0.0
        %462 = vmatmul.mubr.f32.gmra.mxu0 %v380
        %v463 = vpop.f32.mrf.mxu0
        %v464 = vadd.f32 0.0, %v463
        %v465 = vpop.f32.mrf.mxu0
        %466 = vdwg.mxu0
        %vm467 = vcmask 64512
        %468 = vst.msk [vmem:[%s342] sm:$0xff] %vm467, %v449
        %469 = vst.msk [vmem:[%s342 + $0x8] sm:$0xff] %vm467, %v454
        %470 = vst.msk [vmem:[%s342 + $0x10] sm:$0xff] %vm467, %v459
        %471 = vst.msk [vmem:[%s342 + $0x18] sm:$0xff] %vm467, %v464
        %v472 = vld [vmem:[%s3] sm:$0xff]
        %v473 = vld [vmem:[%s4] sm:$0x1]
        %v474 = vld [vmem:[%s4 + $0x1] sm:$0x1]
        %v475 = vld [vmem:[%s4 + $0x2] sm:$0x1]
        %v476 = vld [vmem:[%s4 + $0x3] sm:$0x1]
        %v477 = vld [vmem:[%s4 + $0x4] sm:$0x1]
        %v478 = vld [vmem:[%s4 + $0x5] sm:$0x1]
        %v479 = vld [vmem:[%s4 + $0x6] sm:$0x1]
        %v480 = vld [vmem:[%s4 + $0x7] sm:$0x1]
        %v489 = vlaneseq
        %v490 = vshrl.u32 %v489, 7
        %v491 = vsub.s32 0, %v490
        %v492 = vrot.slane %v473, %v491
        %v493 = vlaneseq
        %v494 = vshrl.u32 %v493, 7
        %v495 = vsub.s32 0, %v494
        %v496 = vrot.slane %v474, %v495
        %v497 = vlaneseq
        %v498 = vshrl.u32 %v497, 7
        %v499 = vsub.s32 0, %v498
        %v500 = vrot.slane %v475, %v499
        %v501 = vlaneseq
        %v502 = vshrl.u32 %v501, 7
        %v503 = vsub.s32 0, %v502
        %v504 = vrot.slane %v476, %v503
        %v505 = vlaneseq
        %v506 = vshrl.u32 %v505, 7
        %v507 = vsub.s32 0, %v506
        %v508 = vrot.slane %v477, %v507
        %v509 = vlaneseq
        %v510 = vshrl.u32 %v509, 7
        %v511 = vsub.s32 0, %v510
        %v512 = vrot.slane %v478, %v511
        %v513 = vlaneseq
        %v514 = vshrl.u32 %v513, 7
        %v515 = vsub.s32 0, %v514
        %v516 = vrot.slane %v479, %v515
        %v517 = vlaneseq
        %v518 = vshrl.u32 %v517, 7
        %v519 = vsub.s32 0, %v518
        %v520 = vrot.slane %v480, %v519
        %521 = vset.pattern.permute.xlu0 0
        %522 = vperm.xlu0 %521, %v492
        %v523 = vpop.permute.xlu0 %522
        %525 = vset.pattern.permute.xlu0 0
        %526 = vperm.xlu0 %525, %v496
        %v527 = vpop.permute.xlu0 %526
        %529 = vset.pattern.permute.xlu0 0
        %530 = vperm.xlu0 %529, %v500
        %v531 = vpop.permute.xlu0 %530
        %533 = vset.pattern.permute.xlu0 0
        %534 = vperm.xlu0 %533, %v504
        %v535 = vpop.permute.xlu0 %534
        %537 = vset.pattern.permute.xlu0 0
        %538 = vperm.xlu0 %537, %v508
        %v539 = vpop.permute.xlu0 %538
        %541 = vset.pattern.permute.xlu0 0
        %542 = vperm.xlu0 %541, %v512
        %v543 = vpop.permute.xlu0 %542
        %545 = vset.pattern.permute.xlu0 0
        %546 = vperm.xlu0 %545, %v516
        %v547 = vpop.permute.xlu0 %546
        %549 = vset.pattern.permute.xlu0 0
        %550 = vperm.xlu0 %549, %v520
        %v551 = vpop.permute.xlu0 %550
        %v554 = vcombine.high %v472, %v472
        %v556 = vunpack.c.l.s4 1966171168
        %v557 = vunpack.c.0.s8 %v556
        %v558 = vlaneseq
        %v559 = vshrl.u32 %v558, 7
        %v560 = vsub.s32 %v557, %v559
        %v561 = vrot.slane %v472, %v560
        %v563 = vunpack.c.l.s4 1966171168
        %v564 = vunpack.c.0.s8 %v563
        %v565 = vlaneseq
        %v566 = vshrl.u32 %v565, 7
        %v567 = vsub.s32 %v564, %v566
        %v568 = vrot.slane %v554, %v567
        %v569 = vcombine.high %v561, %v561
        %v570 = vcombine.high %v568, %v568
        %v572 = vunpack.c.l.s4 1966171168
        %v573 = vunpack.c.0.s8 %v572
        %v574 = vlaneseq
        %v575 = vshrl.u32 %v574, 7
        %v576 = vsub.s32 %v573, %v575
        %v577 = vrot.slane %v561, %v576
        %v579 = vunpack.c.l.s4 1966171168
        %v580 = vunpack.c.0.s8 %v579
        %v581 = vlaneseq
        %v582 = vshrl.u32 %v581, 7
        %v583 = vsub.s32 %v580, %v582
        %v584 = vrot.slane %v568, %v583
        %v586 = vunpack.c.l.s4 1966171168
        %v587 = vunpack.c.0.s8 %v586
        %v588 = vlaneseq
        %v589 = vshrl.u32 %v588, 7
        %v590 = vsub.s32 %v587, %v589
        %v591 = vrot.slane %v569, %v590
        %v593 = vunpack.c.l.s4 1966171168
        %v594 = vunpack.c.0.s8 %v593
        %v595 = vlaneseq
        %v596 = vshrl.u32 %v595, 7
        %v597 = vsub.s32 %v594, %v596
        %v598 = vrot.slane %v570, %v597
        %v599 = vcombine.high %v577, %v577
        %v600 = vcombine.high %v584, %v584
        %v601 = vcombine.high %v591, %v591
        %v602 = vcombine.high %v598, %v598
        %v603 = vlaneseq
        %v604 = vshrl.u32 %v603, 7
        %v605 = vsub.s32 0, %v604
        %v606 = vrot.slane %v577, %v605
        %v607 = vlaneseq
        %v608 = vshrl.u32 %v607, 7
        %v609 = vsub.s32 0, %v608
        %v610 = vrot.slane %v591, %v609
        %v611 = vlaneseq
        %v612 = vshrl.u32 %v611, 7
        %v613 = vsub.s32 0, %v612
        %v614 = vrot.slane %v599, %v613
        %v615 = vlaneseq
        %v616 = vshrl.u32 %v615, 7
        %v617 = vsub.s32 0, %v616
        %v618 = vrot.slane %v601, %v617
        %v619 = vlaneseq
        %v620 = vshrl.u32 %v619, 7
        %v621 = vsub.s32 0, %v620
        %v622 = vrot.slane %v584, %v621
        %v623 = vlaneseq
        %v624 = vshrl.u32 %v623, 7
        %v625 = vsub.s32 0, %v624
        %v626 = vrot.slane %v598, %v625
        %v627 = vlaneseq
        %v628 = vshrl.u32 %v627, 7
        %v629 = vsub.s32 0, %v628
        %v630 = vrot.slane %v600, %v629
        %v631 = vlaneseq
        %v632 = vshrl.u32 %v631, 7
        %v633 = vsub.s32 0, %v632
        %v634 = vrot.slane %v602, %v633
        %635 = vset.pattern.permute.xlu0 0
        %636 = vperm.xlu0 %635, %v606
        %v637 = vpop.permute.xlu0 %636
        %639 = vset.pattern.permute.xlu0 0
        %640 = vperm.xlu0 %639, %v610
        %v641 = vpop.permute.xlu0 %640
        %643 = vset.pattern.permute.xlu0 0
        %644 = vperm.xlu0 %643, %v614
        %v645 = vpop.permute.xlu0 %644
        %647 = vset.pattern.permute.xlu0 0
        %648 = vperm.xlu0 %647, %v618
        %v649 = vpop.permute.xlu0 %648
        %651 = vset.pattern.permute.xlu0 0
        %652 = vperm.xlu0 %651, %v622
        %v653 = vpop.permute.xlu0 %652
        %655 = vset.pattern.permute.xlu0 0
        %656 = vperm.xlu0 %655, %v626
        %v657 = vpop.permute.xlu0 %656
        %659 = vset.pattern.permute.xlu0 0
        %660 = vperm.xlu0 %659, %v630
        %v661 = vpop.permute.xlu0 %660
        %663 = vset.pattern.permute.xlu0 0
        %664 = vperm.xlu0 %663, %v634
        %v665 = vpop.permute.xlu0 %664
        %v667 = vmul.f32 %v637, %v449
        %v668 = vmul.f32 %v641, %v449
        %v669 = vmul.f32 %v645, %v449
        %v670 = vmul.f32 %v649, %v449
        %v671 = vmul.f32 %v653, %v449
        %v672 = vmul.f32 %v657, %v449
        %v673 = vmul.f32 %v661, %v449
        %v674 = vmul.f32 %v665, %v449
        %v675 = vadd.f32 %v523, %v667
        %v676 = vadd.f32 %v527, %v668
        %v677 = vadd.f32 %v531, %v669
        %v678 = vadd.f32 %v535, %v670
        %v679 = vadd.f32 %v539, %v671
        %v680 = vadd.f32 %v543, %v672
        %v681 = vadd.f32 %v547, %v673
        %v682 = vadd.f32 %v551, %v674
        %683 = vset.pattern.permute.xlu0 1
        %684 = vperm.xlu0 %683, %v606
        %v685 = vpop.permute.xlu0 %684
        %687 = vset.pattern.permute.xlu0 1
        %688 = vperm.xlu0 %687, %v610
        %v689 = vpop.permute.xlu0 %688
        %691 = vset.pattern.permute.xlu0 1
        %692 = vperm.xlu0 %691, %v614
        %v693 = vpop.permute.xlu0 %692
        %695 = vset.pattern.permute.xlu0 1
        %696 = vperm.xlu0 %695, %v618
        %v697 = vpop.permute.xlu0 %696
        %699 = vset.pattern.permute.xlu0 1
        %700 = vperm.xlu0 %699, %v622
        %v701 = vpop.permute.xlu0 %700
        %703 = vset.pattern.permute.xlu0 1
        %704 = vperm.xlu0 %703, %v626
        %v705 = vpop.permute.xlu0 %704
        %707 = vset.pattern.permute.xlu0 1
        %708 = vperm.xlu0 %707, %v630
        %v709 = vpop.permute.xlu0 %708
        %711 = vset.pattern.permute.xlu0 1
        %712 = vperm.xlu0 %711, %v634
        %v713 = vpop.permute.xlu0 %712
        %v715 = vmul.f32 %v685, %v454
        %v716 = vmul.f32 %v689, %v454
        %v717 = vmul.f32 %v693, %v454
        %v718 = vmul.f32 %v697, %v454
        %v719 = vmul.f32 %v701, %v454
        %v720 = vmul.f32 %v705, %v454
        %v721 = vmul.f32 %v709, %v454
        %v722 = vmul.f32 %v713, %v454
        %v723 = vadd.f32 %v675, %v715
        %v724 = vadd.f32 %v676, %v716
        %v725 = vadd.f32 %v677, %v717
        %v726 = vadd.f32 %v678, %v718
        %v727 = vadd.f32 %v679, %v719
        %v728 = vadd.f32 %v680, %v720
        %v729 = vadd.f32 %v681, %v721
        %v730 = vadd.f32 %v682, %v722
        %731 = vset.pattern.permute.xlu0 2
        %732 = vperm.xlu0 %731, %v606
        %v733 = vpop.permute.xlu0 %732
        %735 = vset.pattern.permute.xlu0 2
        %736 = vperm.xlu0 %735, %v610
        %v737 = vpop.permute.xlu0 %736
        %739 = vset.pattern.permute.xlu0 2
        %740 = vperm.xlu0 %739, %v614
        %v741 = vpop.permute.xlu0 %740
        %743 = vset.pattern.permute.xlu0 2
        %744 = vperm.xlu0 %743, %v618
        %v745 = vpop.permute.xlu0 %744
        %747 = vset.pattern.permute.xlu0 2
        %748 = vperm.xlu0 %747, %v622
        %v749 = vpop.permute.xlu0 %748
        %751 = vset.pattern.permute.xlu0 2
        %752 = vperm.xlu0 %751, %v626
        %v753 = vpop.permute.xlu0 %752
        %755 = vset.pattern.permute.xlu0 2
        %756 = vperm.xlu0 %755, %v630
        %v757 = vpop.permute.xlu0 %756
        %759 = vset.pattern.permute.xlu0 2
        %760 = vperm.xlu0 %759, %v634
        %v761 = vpop.permute.xlu0 %760
        %v763 = vmul.f32 %v733, %v459
        %v764 = vmul.f32 %v737, %v459
        %v765 = vmul.f32 %v741, %v459
        %v766 = vmul.f32 %v745, %v459
        %v767 = vmul.f32 %v749, %v459
        %v768 = vmul.f32 %v753, %v459
        %v769 = vmul.f32 %v757, %v459
        %v770 = vmul.f32 %v761, %v459
        %v771 = vadd.f32 %v723, %v763
        %v772 = vadd.f32 %v724, %v764
        %v773 = vadd.f32 %v725, %v765
        %v774 = vadd.f32 %v726, %v766
        %v775 = vadd.f32 %v727, %v767
        %v776 = vadd.f32 %v728, %v768
        %v777 = vadd.f32 %v729, %v769
        %v778 = vadd.f32 %v730, %v770
        %779 = vset.pattern.permute.xlu0 3
        %780 = vperm.xlu0 %779, %v606
        %v781 = vpop.permute.xlu0 %780
        %783 = vset.pattern.permute.xlu0 3
        %784 = vperm.xlu0 %783, %v610
        %v785 = vpop.permute.xlu0 %784
        %787 = vset.pattern.permute.xlu0 3
        %788 = vperm.xlu0 %787, %v614
        %v789 = vpop.permute.xlu0 %788
        %791 = vset.pattern.permute.xlu0 3
        %792 = vperm.xlu0 %791, %v618
        %v793 = vpop.permute.xlu0 %792
        %795 = vset.pattern.permute.xlu0 3
        %796 = vperm.xlu0 %795, %v622
        %v797 = vpop.permute.xlu0 %796
        %799 = vset.pattern.permute.xlu0 3
        %800 = vperm.xlu0 %799, %v626
        %v801 = vpop.permute.xlu0 %800
        %803 = vset.pattern.permute.xlu0 3
        %804 = vperm.xlu0 %803, %v630
        %v805 = vpop.permute.xlu0 %804
        %807 = vset.pattern.permute.xlu0 3
        %808 = vperm.xlu0 %807, %v634
        %v809 = vpop.permute.xlu0 %808
        %v811 = vmul.f32 %v781, %v464
        %v812 = vmul.f32 %v785, %v464
        %v813 = vmul.f32 %v789, %v464
        %v814 = vmul.f32 %v793, %v464
        %v815 = vmul.f32 %v797, %v464
        %v816 = vmul.f32 %v801, %v464
        %v817 = vmul.f32 %v805, %v464
        %v818 = vmul.f32 %v809, %v464
        %v819 = vadd.f32 %v771, %v811
        %v820 = vadd.f32 %v772, %v812
        %v821 = vadd.f32 %v773, %v813
        %v822 = vadd.f32 %v774, %v814
        %v823 = vadd.f32 %v775, %v815
        %v824 = vadd.f32 %v776, %v816
        %v825 = vadd.f32 %v777, %v817
        %v826 = vadd.f32 %v778, %v818
        %v827 = vld [vmem:[%s304] sm:$0xff]
        %v828 = vld [vmem:[%s304 + $0x8] sm:$0xff]
        %v829 = vld [vmem:[%s304 + $0x10] sm:$0xff]
        %v830 = vld [vmem:[%s304 + $0x18] sm:$0xff]
        %v831 = vld [vmem:[%s304 + $0x20] sm:$0xff]
        %v832 = vld [vmem:[%s304 + $0x28] sm:$0xff]
        %v833 = vld [vmem:[%s304 + $0x30] sm:$0xff]
        %v834 = vld [vmem:[%s304 + $0x38] sm:$0xff]
        %v835 = vadd.f32 %v827, %v819
        %v836 = vadd.f32 %v828, %v820
        %v837 = vadd.f32 %v829, %v821
        %v838 = vadd.f32 %v830, %v822
        %v839 = vadd.f32 %v831, %v823
        %v840 = vadd.f32 %v832, %v824
        %v841 = vadd.f32 %v833, %v825
        %v842 = vadd.f32 %v834, %v826
        %843 = vst.msk [vmem:[%s335] sm:$0xff] %vm467, %v835
        %844 = vst.msk [vmem:[%s335 + $0x8] sm:$0xff] %vm467, %v836
        %845 = vst.msk [vmem:[%s335 + $0x10] sm:$0xff] %vm467, %v837
        %846 = vst.msk [vmem:[%s335 + $0x18] sm:$0xff] %vm467, %v838
        %847 = vst.msk [vmem:[%s335 + $0x20] sm:$0xff] %vm467, %v839
        %848 = vst.msk [vmem:[%s335 + $0x28] sm:$0xff] %vm467, %v840
        %849 = vst.msk [vmem:[%s335 + $0x30] sm:$0xff] %vm467, %v841
        %850 = vst.msk [vmem:[%s335 + $0x38] sm:$0xff] %vm467, %v842
        %s851 = sand.u32 %s171, 1
        %s852 = scalar_lea.sflag [#allocation4], %s851
        %s853 = sand.u32 %s171, 1
        %s854 = smul.addr %s853, 64
        %s855 = scalar_lea.vmem [#allocation7], %s854
        %s856 = sand.u32 %s199, 1
        %s857 = scalar_lea.sflag [#allocation9], %s856
        %s858 = sand.u32 %s199, 1
        %s859 = smul.addr %s858, 32
        %s860 = scalar_lea.vmem [#allocation8], %s859
        // Predicated region
        $region49: #{tpu_custom_call.1} parent=39 // pred_check
          %p861 = pneg %p181
        $region50: #{tpu_custom_call.1} parent=39 // pred_check_branch
          %863 = sbr.rel (%p861) target = $region52
        $region51: #{tpu_custom_call.1} parent=39 // pred_region
          %s865 = ssub.s32 1024, 1024
          %866 = vsyncadd %s852, %s865
          %s867 = smul.addr %s34, 8
          %s868 = sadd.s32 %s35, %s867
          %s869 = smul.addr %s868, 128
          %s870 = scalar_lea.hbm %s5, %s869
          %s871 = sshll.u32 %s855, 4
          %s872 = int_to_ptr.vmem [resolvable:$true] %s871
          %877 = dma.vmem_to_hbm [thread:$0]  %s872, 1024, %s870, %s852, 128, 128, 8
        $region52: #{tpu_custom_call.1} parent=39 // pred_fallthru
          _
        // Predicated region
        $region53: #{tpu_custom_call.1} parent=39 // pred_check
          %p878 = pneg %p209
        $region54: #{tpu_custom_call.1} parent=39 // pred_check_branch
          %880 = sbr.rel (%p878) target = $region56
        $region55: #{tpu_custom_call.1} parent=39 // pred_region
          %s882 = ssub.s32 512, 512
          %883 = vsyncadd %s857, %s882
          %s884 = smul.addr %s34, 4
          %s885 = sadd.s32 %s35, %s884
          %s886 = smul.addr %s885, 128
          %s887 = scalar_lea.hbm %s6, %s886
          %s888 = sshll.u32 %s860, 4
          %s889 = int_to_ptr.vmem [resolvable:$true] %s888
          %894 = dma.vmem_to_hbm [thread:$0]  %s889, 512, %s887, %s857, 128, 128, 8
        $region56: #{tpu_custom_call.1} parent=39 // pred_fallthru
          _
      $region40: #{tpu_custom_call.1} parent=5 // pred_fallthru
        _
      %p895 = scmp.le.s32.totalorder 2, %s25
      // Predicated region
      $region57: #{tpu_custom_call.1} parent=5 // pred_check
        %p896 = pneg %p895
      $region58: #{tpu_custom_call.1} parent=5 // pred_check_branch
        %898 = sbr.rel (%p896) target = $region60
      $region59: #{tpu_custom_call.1} parent=5 // pred_region
        %s899 = ssub.s32 %s25, 2
        // Predicated region
        $region61: #{tpu_custom_call.1} parent=59 // pred_check
          %p900 = pneg %p187
        $region62: #{tpu_custom_call.1} parent=59 // pred_check_branch
          %902 = sbr.rel (%p900) target = $region64
        $region63: #{tpu_custom_call.1} parent=59 // pred_region
          %s903 = sand.u32 %s172, 1
          %s904 = scalar_lea.sflag [#allocation4], %s903
          %s905 = sand.u32 %s172, 1
          %s906 = smul.addr %s905, 64
          %s907 = scalar_lea.vmem [#allocation7], %s906
          %908 = dma.done %s904, 1024
        $region64: #{tpu_custom_call.1} parent=59 // pred_fallthru
          _
        // Predicated region
        $region65: #{tpu_custom_call.1} parent=59 // pred_check
          %p909 = pneg %p215
        $region66: #{tpu_custom_call.1} parent=59 // pred_check_branch
          %911 = sbr.rel (%p909) target = $region68
        $region67: #{tpu_custom_call.1} parent=59 // pred_region
          %s912 = sand.u32 %s200, 1
          %s913 = scalar_lea.sflag [#allocation9], %s912
          %s914 = sand.u32 %s200, 1
          %s915 = smul.addr %s914, 32
          %s916 = scalar_lea.vmem [#allocation8], %s915
          %917 = dma.done %s913, 512
        $region68: #{tpu_custom_call.1} parent=59 // pred_fallthru
          _
      $region60: #{tpu_custom_call.1} parent=5 // pred_fallthru
        _
    $region6: #{tpu_custom_call.1} parent=1 // loop_footer
      %s29 = sadd.s32 1, %s25
    $region7: #{tpu_custom_call.1} parent=1 // loop_footer_branch
      %24 = sbr.rel target = $region3
    $region8: #{tpu_custom_call.1} parent=1 // loop_exit
      _
    %918 = vsyncpa [#allocation3], 1
    %s919 = scalar_lea.sflag [#allocation3], 1
    %920 = vsyncpa %s919, 1
    %921 = vsyncpa [#allocation6], 1
    %s922 = scalar_lea.sflag [#allocation6], 1
    %923 = vsyncpa %s922, 1
    %924 = vsyncpa [#allocation4], 1
    %s925 = scalar_lea.sflag [#allocation4], 1
    %926 = vsyncpa %s925, 1
    %927 = vsyncpa [#allocation9], 1
    %s928 = scalar_lea.sflag [#allocation9], 1
    %929 = vsyncpa %s928, 1

</llo_original>
